<compile_context>
chip_gen: v5e
topology: v5e:2x2
jax: 0.10.0
libtpu: 0.0.40
codegen_flags: <defaults>
</compile_context>

<pallas_src>
import jax
import jax.numpy as jnp
from jax.experimental import pallas as pl
from jax.experimental.pallas import tpu as pltpu


def _round_up(x, m):
    return (x + m - 1) // m * m


# -----------------------------------------------------------------------------
# Kernel
# -----------------------------------------------------------------------------
def lstm_classifier_kernel(
    x_ref,     # (T, TB, I)   time-major input, one batch tile
    wih_ref,   # (I, 4H)      W_ih^T, PyTorch gate order [i, f, g, o]
    whh_ref,   # (H, 4H)      W_hh^T
    b_ref,     # (1, 4H)      b_ih + b_hh
    w1_ref,    # (H, 32)      classifier Linear1 weight^T
    b1_ref,    # (1, 32)
    w2_ref,    # (32, CP)     classifier Linear2 weight^T, lane-padded (zeros)
    b2_ref,    # (1, CP)      lane-padded (zeros)
    out_ref,   # (TB, CP)     lane-dense logits slab
    gx_sc,     # VMEM scratch (T*TB, 4H) f32 — hoisted input projection
):
    T, TB, I = x_ref.shape
    H = whh_ref.shape[0]
    f32 = jnp.float32

    # ---- phase 1: input projection hoisted out of the recurrence (one GEMM) ----
    x2 = x_ref[...].reshape(T * TB, I)
    gx_sc[...] = (
        jnp.dot(x2, wih_ref[...], preferred_element_type=f32) + b_ref[...]
    )

    # Hoisted per-lane masks: gates are [i | f | g | o]; g-lanes get tanh,
    # the rest get sigmoid via sigmoid(x) = 0.5 * tanh(0.5 * x) + 0.5.
    lane = jax.lax.broadcasted_iota(jnp.int32, (TB, 4 * H), 1)
    is_g = (lane >= 2 * H) & (lane < 3 * H)
    scale = jnp.where(is_g, jnp.float32(1.0), jnp.float32(0.5))

    # ---- phase 2: recurrence, statically unrolled over the short fixed T ----
    h = jnp.zeros((TB, H), f32)
    c = jnp.zeros((TB, H), f32)
    whh = whh_ref[...]
    for t in range(T):
        pre = gx_sc[t * TB:(t + 1) * TB, :] + jnp.dot(
            h, whh, preferred_element_type=f32
        )  # (TB, 4H)
        th = jnp.tanh(pre * scale)                  # one EUP tanh over all gates
        act = jnp.where(is_g, th, 0.5 * th + 0.5)   # sigmoid for i/f/o, tanh for g
        i_g = act[:, 0 * H:1 * H]
        f_g = act[:, 1 * H:2 * H]
        g_g = act[:, 2 * H:3 * H]
        o_g = act[:, 3 * H:4 * H]
        c = f_g * c + i_g * g_g
        h = o_g * jnp.tanh(c)

    # ---- phase 3: classifier head (ReLU -> Linear(H,32) -> ReLU -> Linear(32,C)) ----
    z = jnp.maximum(h, 0.0)
    z = jnp.dot(z, w1_ref[...], preferred_element_type=f32) + b1_ref[...]
    z = jnp.maximum(z, 0.0)
    logits = jnp.dot(z, w2_ref[...], preferred_element_type=f32) + b2_ref[...]
    out_ref[...] = logits.astype(out_ref.dtype)


# -----------------------------------------------------------------------------
# Wrapper
# -----------------------------------------------------------------------------
def stock_lstm_classifier(x, params):
    """x: (batch, seq, input_size) float32 — same convention as the PyTorch module."""
    B, T, I = x.shape
    H = params["w_hh"].shape[1]          # w_hh: (4H, H)
    C = params["w2"].shape[0]            # w2:   (C, 32)
    f32 = jnp.float32

    CP = _round_up(C, 128)               # lane-dense output slab width
    TB = 256 if B > 256 else _round_up(B, 8)   # batch tile (sublane-aligned)
    BP = _round_up(B, TB)
    nb = BP // TB

    # Weights in plain row-major matmul layout, PyTorch gate order kept.
    wih_t = params["w_ih"].T.astype(f32)                       # (I, 4H)
    whh_t = params["w_hh"].T.astype(f32)                       # (H, 4H)
    b_sum = (params["b_ih"] + params["b_hh"]).reshape(1, 4 * H).astype(f32)
    w1_t = params["w1"].T.astype(f32)                          # (H, 32)
    b1 = params["b1"].reshape(1, -1).astype(f32)               # (1, 32)
    w2_p = jnp.zeros((params["w2"].shape[1], CP), f32).at[:, :C].set(
        params["w2"].T.astype(f32))                            # (32, CP)
    b2_p = jnp.zeros((1, CP), f32).at[0, :C].set(params["b2"].astype(f32))

    # Time-major, batch-padded input (padded rows are zero, sliced off below).
    # TODO(synk): at production T*B, grid over T with a BlockSpec index_map on the
    #             original (B, T, I) layout instead of materializing this transpose.
    x_tm = jnp.zeros((T, BP, I), f32).at[:, :B, :].set(jnp.transpose(x, (1, 0, 2)))

    out = pl.pallas_call(
        lstm_classifier_kernel,
        out_shape=jax.ShapeDtypeStruct((BP, CP), f32),
        grid_spec=pltpu.PrefetchScalarGridSpec(
            num_scalar_prefetch=0,
            grid=(nb,),
            in_specs=[
                pl.BlockSpec((T, TB, I), lambda i: (0, i, 0)),
                pl.BlockSpec((I, 4 * H), lambda i: (0, 0)),
                pl.BlockSpec((H, 4 * H), lambda i: (0, 0)),
                pl.BlockSpec((1, 4 * H), lambda i: (0, 0)),
                pl.BlockSpec((H, w1_t.shape[1]), lambda i: (0, 0)),
                pl.BlockSpec((1, b1.shape[1]), lambda i: (0, 0)),
                pl.BlockSpec((w2_p.shape[0], CP), lambda i: (0, 0)),
                pl.BlockSpec((1, CP), lambda i: (0, 0)),
            ],
            out_specs=pl.BlockSpec((TB, CP), lambda i: (i, 0)),
            scratch_shapes=[pltpu.VMEM((T * TB, 4 * H), f32)],
        ),
        compiler_params=pltpu.CompilerParams(
            dimension_semantics=("parallel",),
        ),
    )(x_tm, wih_t, whh_t, b_sum, w1_t, b1, w2_p, b2_p)
    return out[:B, :C]


# -----------------------------------------------------------------------------
# Deterministic parameter init (PyTorch-style uniform(-1/sqrt(fan_in), ...))
# -----------------------------------------------------------------------------
def init_params(key, input_size=14, hidden_size=64, num_classes=3):
    ks = jax.random.split(key, 8)
    H, I, C = hidden_size, input_size, num_classes
    s_lstm = 1.0 / jnp.sqrt(H)
    s_l1 = 1.0 / jnp.sqrt(H)
    s_l2 = 1.0 / jnp.sqrt(32)

    def u(k, shape, s):
        return jax.random.uniform(k, shape, jnp.float32, -s, s)

    return {
        "w_ih": u(ks[0], (4 * H, I), s_lstm),
        "w_hh": u(ks[1], (4 * H, H), s_lstm),
        "b_ih": u(ks[2], (4 * H,), s_lstm),
        "b_hh": u(ks[3], (4 * H,), s_lstm),
        "w1":   u(ks[4], (32, H), s_l1),
        "b1":   u(ks[5], (32,), s_l1),
        "w2":   u(ks[6], (C, 32), s_l2),
        "b2":   u(ks[7], (C,), s_l2),
    }


# -----------------------------------------------------------------------------
# Pure-JAX reference (mirrors torch.nn.LSTM + classifier)
# -----------------------------------------------------------------------------
def reference_forward(x, params):
    B, T, I = x.shape
    H = params["w_hh"].shape[1]
    wih_t = params["w_ih"].T
    whh_t = params["w_hh"].T
    b = params["b_ih"] + params["b_hh"]
    h = jnp.zeros((B, H), jnp.float32)
    c = jnp.zeros((B, H), jnp.float32)
    for t in range(T):
        g = x[:, t, :] @ wih_t + h @ whh_t + b
        i_g = jax.nn.sigmoid(g[:, 0 * H:1 * H])
        f_g = jax.nn.sigmoid(g[:, 1 * H:2 * H])
        g_g = jnp.tanh(g[:, 2 * H:3 * H])
        o_g = jax.nn.sigmoid(g[:, 3 * H:4 * H])
        c = f_g * c + i_g * g_g
        h = o_g * jnp.tanh(c)
    z = jnp.maximum(h, 0.0) @ params["w1"].T + params["b1"]
    z = jnp.maximum(z, 0.0) @ params["w2"].T + params["b2"]
    return z


if __name__ == "__main__":
    key = jax.random.PRNGKey(0)
    k_param, k_x = jax.random.split(key)

    batch, seq, input_size, hidden_size, num_classes = 2, 8, 14, 64, 3
    params = init_params(k_param, input_size, hidden_size, num_classes)
    x = jax.random.normal(k_x, (batch, seq, input_size), jnp.float32)

    out = stock_lstm_classifier(x, params)
    out = jax.block_until_ready(out)

    ref = reference_forward(x, params)
    assert out.shape == (batch, num_classes)
    assert jnp.allclose(out, ref, atol=2e-4, rtol=2e-4), "mismatch vs reference"

    print("KERNEL_OK")
</pallas_src>

<mosaic_0001>
module attributes {stable_mosaic.version = 11 : i64} {
  func.func @lstm_classifier_kernel(%arg0: i32, %arg1: memref<8x8x14xf32, #tpu.memory_space<vmem>>, %arg2: memref<14x256xf32, #tpu.memory_space<vmem>>, %arg3: memref<64x256xf32, #tpu.memory_space<vmem>>, %arg4: memref<1x256xf32, #tpu.memory_space<vmem>>, %arg5: memref<64x32xf32, #tpu.memory_space<vmem>>, %arg6: memref<1x32xf32, #tpu.memory_space<vmem>>, %arg7: memref<32x128xf32, #tpu.memory_space<vmem>>, %arg8: memref<1x128xf32, #tpu.memory_space<vmem>>, %arg9: memref<8x128xf32, #tpu.memory_space<vmem>>, %arg10: memref<64x256xf32, #tpu.memory_space<vmem>>) attributes {dimension_semantics = [#tpu.dimension_semantics<parallel>], iteration_bounds = array<i64: 1>, scalar_prefetch = 0 : i64, scratch_operands = 1 : i64, tpu.core_type = #tpu.core_type<tc>, window_params = [{transform_indices = @transform_0, window_bounds = array<i64: 8, 8, 14>}, {pipeline_mode = #tpu.pipeline_mode<synchronous>, transform_indices = @transform_1, window_bounds = array<i64: 14, 256>}, {pipeline_mode = #tpu.pipeline_mode<synchronous>, transform_indices = @transform_2, window_bounds = array<i64: 64, 256>}, {pipeline_mode = #tpu.pipeline_mode<synchronous>, transform_indices = @transform_3, window_bounds = array<i64: 1, 256>}, {pipeline_mode = #tpu.pipeline_mode<synchronous>, transform_indices = @transform_4, window_bounds = array<i64: 64, 32>}, {pipeline_mode = #tpu.pipeline_mode<synchronous>, transform_indices = @transform_5, window_bounds = array<i64: 1, 32>}, {pipeline_mode = #tpu.pipeline_mode<synchronous>, transform_indices = @transform_6, window_bounds = array<i64: 32, 128>}, {pipeline_mode = #tpu.pipeline_mode<synchronous>, transform_indices = @transform_7, window_bounds = array<i64: 1, 128>}, {transform_indices = @transform_8, window_bounds = array<i64: 8, 128>}]} {
    %c0 = arith.constant 0 : index
    %c0_0 = arith.constant 0 : index
    %c0_1 = arith.constant 0 : index
    %0 = vector.load %arg1[%c0, %c0_0, %c0_1] : memref<8x8x14xf32, #tpu.memory_space<vmem>>, vector<8x8x14xf32>
    %1 = vector.shape_cast %0 : vector<8x8x14xf32> to vector<64x14xf32>
    %c0_2 = arith.constant 0 : index
    %c0_3 = arith.constant 0 : index
    %2 = vector.load %arg2[%c0_2, %c0_3] : memref<14x256xf32, #tpu.memory_space<vmem>>, vector<14x256xf32>
    %cst = arith.constant dense<0.000000e+00> : vector<64x256xf32>
    %3 = tpu.matmul %1, %2, %cst {dimension_numbers = #tpu.dot_dimension_numbers<[1], [0], [0], [1], [0, 0, 1, 1], [], []>} : vector<64x14xf32>, vector<14x256xf32>, vector<64x256xf32> -> vector<64x256xf32>
    %c0_4 = arith.constant 0 : index
    %c0_5 = arith.constant 0 : index
    %4 = vector.load %arg4[%c0_4, %c0_5] : memref<1x256xf32, #tpu.memory_space<vmem>>, vector<1x256xf32>
    %5 = vector.broadcast %4 : vector<1x256xf32> to vector<64x256xf32>
    %6 = arith.addf %3, %5 : vector<64x256xf32>
    %c0_6 = arith.constant 0 : index
    %c0_7 = arith.constant 0 : index
    %7 = vector.load %arg10[%c0_6, %c0_7] : memref<64x256xf32, #tpu.memory_space<vmem>>, vector<64x256xf32>
    tpu.vector_store %arg10[%c0_6, %c0_7], %6 {strides = array<i32>} : memref<64x256xf32, #tpu.memory_space<vmem>>, vector<64x256xf32>,
    %8 = tpu.iota {dimensions = array<i32: 1>} : vector<8x256xi32>
    %c128_i32 = arith.constant 128 : i32
    %9 = vector.broadcast %c128_i32 : i32 to vector<8x256xi32>
    %10 = arith.cmpi sge, %8, %9 : vector<8x256xi32>
    %c192_i32 = arith.constant 192 : i32
    %11 = vector.broadcast %c192_i32 : i32 to vector<8x256xi32>
    %12 = arith.cmpi slt, %8, %11 : vector<8x256xi32>
    %13 = arith.andi %10, %12 : vector<8x256xi1>
    %cst_8 = arith.constant 1.000000e+00 : f32
    %cst_9 = arith.constant 5.000000e-01 : f32
    %14 = vector.broadcast %cst_8 : f32 to vector<8x256xf32>
    %15 = vector.broadcast %cst_9 : f32 to vector<8x256xf32>
    %16 = arith.select %13, %14, %15 : vector<8x256xi1>, vector<8x256xf32>
    %cst_10 = arith.constant 0.000000e+00 : f32
    %17 = vector.broadcast %cst_10 : f32 to vector<8x64xf32>
    %cst_11 = arith.constant 0.000000e+00 : f32
    %18 = vector.broadcast %cst_11 : f32 to vector<8x64xf32>
    %c0_12 = arith.constant 0 : index
    %c0_13 = arith.constant 0 : index
    %19 = vector.load %arg3[%c0_12, %c0_13] : memref<64x256xf32, #tpu.memory_space<vmem>>, vector<64x256xf32>
    %c0_14 = arith.constant 0 : index
    %c0_15 = arith.constant 0 : index
    %20 = vector.load %arg10[%c0_14, %c0_15] : memref<64x256xf32, #tpu.memory_space<vmem>>, vector<8x256xf32>
    %cst_16 = arith.constant dense<0.000000e+00> : vector<8x256xf32>
    %21 = tpu.matmul %17, %19, %cst_16 {dimension_numbers = #tpu.dot_dimension_numbers<[1], [0], [0], [1], [0, 0, 1, 1], [], []>} : vector<8x64xf32>, vector<64x256xf32>, vector<8x256xf32> -> vector<8x256xf32>
    %22 = arith.addf %20, %21 : vector<8x256xf32>
    %23 = arith.mulf %22, %16 : vector<8x256xf32>
    %24 = math.tanh %23 : vector<8x256xf32>
    %cst_17 = arith.constant 5.000000e-01 : f32
    %25 = vector.broadcast %cst_17 : f32 to vector<8x256xf32>
    %26 = arith.mulf %25, %24 : vector<8x256xf32>
    %cst_18 = arith.constant 5.000000e-01 : f32
    %27 = vector.broadcast %cst_18 : f32 to vector<8x256xf32>
    %28 = arith.addf %26, %27 : vector<8x256xf32>
    %29 = arith.select %13, %24, %28 : vector<8x256xi1>, vector<8x256xf32>
    %30 = vector.extract_strided_slice %29 {offsets = [0, 0], sizes = [8, 64], strides = [1, 1]} : vector<8x256xf32> to vector<8x64xf32>
    %31 = vector.extract_strided_slice %29 {offsets = [0, 64], sizes = [8, 64], strides = [1, 1]} : vector<8x256xf32> to vector<8x64xf32>
    %32 = vector.extract_strided_slice %29 {offsets = [0, 128], sizes = [8, 64], strides = [1, 1]} : vector<8x256xf32> to vector<8x64xf32>
    %33 = vector.extract_strided_slice %29 {offsets = [0, 192], sizes = [8, 64], strides = [1, 1]} : vector<8x256xf32> to vector<8x64xf32>
    %34 = arith.mulf %31, %18 : vector<8x64xf32>
    %35 = arith.mulf %30, %32 : vector<8x64xf32>
    %36 = arith.addf %34, %35 : vector<8x64xf32>
    %37 = math.tanh %36 : vector<8x64xf32>
    %38 = arith.mulf %33, %37 : vector<8x64xf32>
    %c8 = arith.constant 8 : index
    %c0_19 = arith.constant 0 : index
    %39 = vector.load %arg10[%c8, %c0_19] : memref<64x256xf32, #tpu.memory_space<vmem>>, vector<8x256xf32>
    %cst_20 = arith.constant dense<0.000000e+00> : vector<8x256xf32>
    %40 = tpu.matmul %38, %19, %cst_20 {dimension_numbers = #tpu.dot_dimension_numbers<[1], [0], [0], [1], [0, 0, 1, 1], [], []>} : vector<8x64xf32>, vector<64x256xf32>, vector<8x256xf32> -> vector<8x256xf32>
    %41 = arith.addf %39, %40 : vector<8x256xf32>
    %42 = arith.mulf %41, %16 : vector<8x256xf32>
    %43 = math.tanh %42 : vector<8x256xf32>
    %cst_21 = arith.constant 5.000000e-01 : f32
    %44 = vector.broadcast %cst_21 : f32 to vector<8x256xf32>
    %45 = arith.mulf %44, %43 : vector<8x256xf32>
    %cst_22 = arith.constant 5.000000e-01 : f32
    %46 = vector.broadcast %cst_22 : f32 to vector<8x256xf32>
    %47 = arith.addf %45, %46 : vector<8x256xf32>
    %48 = arith.select %13, %43, %47 : vector<8x256xi1>, vector<8x256xf32>
    %49 = vector.extract_strided_slice %48 {offsets = [0, 0], sizes = [8, 64], strides = [1, 1]} : vector<8x256xf32> to vector<8x64xf32>
    %50 = vector.extract_strided_slice %48 {offsets = [0, 64], sizes = [8, 64], strides = [1, 1]} : vector<8x256xf32> to vector<8x64xf32>
    %51 = vector.extract_strided_slice %48 {offsets = [0, 128], sizes = [8, 64], strides = [1, 1]} : vector<8x256xf32> to vector<8x64xf32>
    %52 = vector.extract_strided_slice %48 {offsets = [0, 192], sizes = [8, 64], strides = [1, 1]} : vector<8x256xf32> to vector<8x64xf32>
    %53 = arith.mulf %50, %36 : vector<8x64xf32>
    %54 = arith.mulf %49, %51 : vector<8x64xf32>
    %55 = arith.addf %53, %54 : vector<8x64xf32>
    %56 = math.tanh %55 : vector<8x64xf32>
    %57 = arith.mulf %52, %56 : vector<8x64xf32>
    %c16 = arith.constant 16 : index
    %c0_23 = arith.constant 0 : index
    %58 = vector.load %arg10[%c16, %c0_23] : memref<64x256xf32, #tpu.memory_space<vmem>>, vector<8x256xf32>
    %cst_24 = arith.constant dense<0.000000e+00> : vector<8x256xf32>
    %59 = tpu.matmul %57, %19, %cst_24 {dimension_numbers = #tpu.dot_dimension_numbers<[1], [0], [0], [1], [0, 0, 1, 1], [], []>} : vector<8x64xf32>, vector<64x256xf32>, vector<8x256xf32> -> vector<8x256xf32>
    %60 = arith.addf %58, %59 : vector<8x256xf32>
    %61 = arith.mulf %60, %16 : vector<8x256xf32>
    %62 = math.tanh %61 : vector<8x256xf32>
    %cst_25 = arith.constant 5.000000e-01 : f32
    %63 = vector.broadcast %cst_25 : f32 to vector<8x256xf32>
    %64 = arith.mulf %63, %62 : vector<8x256xf32>
    %cst_26 = arith.constant 5.000000e-01 : f32
    %65 = vector.broadcast %cst_26 : f32 to vector<8x256xf32>
    %66 = arith.addf %64, %65 : vector<8x256xf32>
    %67 = arith.select %13, %62, %66 : vector<8x256xi1>, vector<8x256xf32>
    %68 = vector.extract_strided_slice %67 {offsets = [0, 0], sizes = [8, 64], strides = [1, 1]} : vector<8x256xf32> to vector<8x64xf32>
    %69 = vector.extract_strided_slice %67 {offsets = [0, 64], sizes = [8, 64], strides = [1, 1]} : vector<8x256xf32> to vector<8x64xf32>
    %70 = vector.extract_strided_slice %67 {offsets = [0, 128], sizes = [8, 64], strides = [1, 1]} : vector<8x256xf32> to vector<8x64xf32>
    %71 = vector.extract_strided_slice %67 {offsets = [0, 192], sizes = [8, 64], strides = [1, 1]} : vector<8x256xf32> to vector<8x64xf32>
    %72 = arith.mulf %69, %55 : vector<8x64xf32>
    %73 = arith.mulf %68, %70 : vector<8x64xf32>
    %74 = arith.addf %72, %73 : vector<8x64xf32>
    %75 = math.tanh %74 : vector<8x64xf32>
    %76 = arith.mulf %71, %75 : vector<8x64xf32>
    %c24 = arith.constant 24 : index
    %c0_27 = arith.constant 0 : index
    %77 = vector.load %arg10[%c24, %c0_27] : memref<64x256xf32, #tpu.memory_space<vmem>>, vector<8x256xf32>
    %cst_28 = arith.constant dense<0.000000e+00> : vector<8x256xf32>
    %78 = tpu.matmul %76, %19, %cst_28 {dimension_numbers = #tpu.dot_dimension_numbers<[1], [0], [0], [1], [0, 0, 1, 1], [], []>} : vector<8x64xf32>, vector<64x256xf32>, vector<8x256xf32> -> vector<8x256xf32>
    %79 = arith.addf %77, %78 : vector<8x256xf32>
    %80 = arith.mulf %79, %16 : vector<8x256xf32>
    %81 = math.tanh %80 : vector<8x256xf32>
    %cst_29 = arith.constant 5.000000e-01 : f32
    %82 = vector.broadcast %cst_29 : f32 to vector<8x256xf32>
    %83 = arith.mulf %82, %81 : vector<8x256xf32>
    %cst_30 = arith.constant 5.000000e-01 : f32
    %84 = vector.broadcast %cst_30 : f32 to vector<8x256xf32>
    %85 = arith.addf %83, %84 : vector<8x256xf32>
    %86 = arith.select %13, %81, %85 : vector<8x256xi1>, vector<8x256xf32>
    %87 = vector.extract_strided_slice %86 {offsets = [0, 0], sizes = [8, 64], strides = [1, 1]} : vector<8x256xf32> to vector<8x64xf32>
    %88 = vector.extract_strided_slice %86 {offsets = [0, 64], sizes = [8, 64], strides = [1, 1]} : vector<8x256xf32> to vector<8x64xf32>
    %89 = vector.extract_strided_slice %86 {offsets = [0, 128], sizes = [8, 64], strides = [1, 1]} : vector<8x256xf32> to vector<8x64xf32>
    %90 = vector.extract_strided_slice %86 {offsets = [0, 192], sizes = [8, 64], strides = [1, 1]} : vector<8x256xf32> to vector<8x64xf32>
    %91 = arith.mulf %88, %74 : vector<8x64xf32>
    %92 = arith.mulf %87, %89 : vector<8x64xf32>
    %93 = arith.addf %91, %92 : vector<8x64xf32>
    %94 = math.tanh %93 : vector<8x64xf32>
    %95 = arith.mulf %90, %94 : vector<8x64xf32>
    %c32 = arith.constant 32 : index
    %c0_31 = arith.constant 0 : index
    %96 = vector.load %arg10[%c32, %c0_31] : memref<64x256xf32, #tpu.memory_space<vmem>>, vector<8x256xf32>
    %cst_32 = arith.constant dense<0.000000e+00> : vector<8x256xf32>
    %97 = tpu.matmul %95, %19, %cst_32 {dimension_numbers = #tpu.dot_dimension_numbers<[1], [0], [0], [1], [0, 0, 1, 1], [], []>} : vector<8x64xf32>, vector<64x256xf32>, vector<8x256xf32> -> vector<8x256xf32>
    %98 = arith.addf %96, %97 : vector<8x256xf32>
    %99 = arith.mulf %98, %16 : vector<8x256xf32>
    %100 = math.tanh %99 : vector<8x256xf32>
    %cst_33 = arith.constant 5.000000e-01 : f32
    %101 = vector.broadcast %cst_33 : f32 to vector<8x256xf32>
    %102 = arith.mulf %101, %100 : vector<8x256xf32>
    %cst_34 = arith.constant 5.000000e-01 : f32
    %103 = vector.broadcast %cst_34 : f32 to vector<8x256xf32>
    %104 = arith.addf %102, %103 : vector<8x256xf32>
    %105 = arith.select %13, %100, %104 : vector<8x256xi1>, vector<8x256xf32>
    %106 = vector.extract_strided_slice %105 {offsets = [0, 0], sizes = [8, 64], strides = [1, 1]} : vector<8x256xf32> to vector<8x64xf32>
    %107 = vector.extract_strided_slice %105 {offsets = [0, 64], sizes = [8, 64], strides = [1, 1]} : vector<8x256xf32> to vector<8x64xf32>
    %108 = vector.extract_strided_slice %105 {offsets = [0, 128], sizes = [8, 64], strides = [1, 1]} : vector<8x256xf32> to vector<8x64xf32>
    %109 = vector.extract_strided_slice %105 {offsets = [0, 192], sizes = [8, 64], strides = [1, 1]} : vector<8x256xf32> to vector<8x64xf32>
    %110 = arith.mulf %107, %93 : vector<8x64xf32>
    %111 = arith.mulf %106, %108 : vector<8x64xf32>
    %112 = arith.addf %110, %111 : vector<8x64xf32>
    %113 = math.tanh %112 : vector<8x64xf32>
    %114 = arith.mulf %109, %113 : vector<8x64xf32>
    %c40 = arith.constant 40 : index
    %c0_35 = arith.constant 0 : index
    %115 = vector.load %arg10[%c40, %c0_35] : memref<64x256xf32, #tpu.memory_space<vmem>>, vector<8x256xf32>
    %cst_36 = arith.constant dense<0.000000e+00> : vector<8x256xf32>
    %116 = tpu.matmul %114, %19, %cst_36 {dimension_numbers = #tpu.dot_dimension_numbers<[1], [0], [0], [1], [0, 0, 1, 1], [], []>} : vector<8x64xf32>, vector<64x256xf32>, vector<8x256xf32> -> vector<8x256xf32>
    %117 = arith.addf %115, %116 : vector<8x256xf32>
    %118 = arith.mulf %117, %16 : vector<8x256xf32>
    %119 = math.tanh %118 : vector<8x256xf32>
    %cst_37 = arith.constant 5.000000e-01 : f32
    %120 = vector.broadcast %cst_37 : f32 to vector<8x256xf32>
    %121 = arith.mulf %120, %119 : vector<8x256xf32>
    %cst_38 = arith.constant 5.000000e-01 : f32
    %122 = vector.broadcast %cst_38 : f32 to vector<8x256xf32>
    %123 = arith.addf %121, %122 : vector<8x256xf32>
    %124 = arith.select %13, %119, %123 : vector<8x256xi1>, vector<8x256xf32>
    %125 = vector.extract_strided_slice %124 {offsets = [0, 0], sizes = [8, 64], strides = [1, 1]} : vector<8x256xf32> to vector<8x64xf32>
    %126 = vector.extract_strided_slice %124 {offsets = [0, 64], sizes = [8, 64], strides = [1, 1]} : vector<8x256xf32> to vector<8x64xf32>
    %127 = vector.extract_strided_slice %124 {offsets = [0, 128], sizes = [8, 64], strides = [1, 1]} : vector<8x256xf32> to vector<8x64xf32>
    %128 = vector.extract_strided_slice %124 {offsets = [0, 192], sizes = [8, 64], strides = [1, 1]} : vector<8x256xf32> to vector<8x64xf32>
    %129 = arith.mulf %126, %112 : vector<8x64xf32>
    %130 = arith.mulf %125, %127 : vector<8x64xf32>
    %131 = arith.addf %129, %130 : vector<8x64xf32>
    %132 = math.tanh %131 : vector<8x64xf32>
    %133 = arith.mulf %128, %132 : vector<8x64xf32>
    %c48 = arith.constant 48 : index
    %c0_39 = arith.constant 0 : index
    %134 = vector.load %arg10[%c48, %c0_39] : memref<64x256xf32, #tpu.memory_space<vmem>>, vector<8x256xf32>
    %cst_40 = arith.constant dense<0.000000e+00> : vector<8x256xf32>
    %135 = tpu.matmul %133, %19, %cst_40 {dimension_numbers = #tpu.dot_dimension_numbers<[1], [0], [0], [1], [0, 0, 1, 1], [], []>} : vector<8x64xf32>, vector<64x256xf32>, vector<8x256xf32> -> vector<8x256xf32>
    %136 = arith.addf %134, %135 : vector<8x256xf32>
    %137 = arith.mulf %136, %16 : vector<8x256xf32>
    %138 = math.tanh %137 : vector<8x256xf32>
    %cst_41 = arith.constant 5.000000e-01 : f32
    %139 = vector.broadcast %cst_41 : f32 to vector<8x256xf32>
    %140 = arith.mulf %139, %138 : vector<8x256xf32>
    %cst_42 = arith.constant 5.000000e-01 : f32
    %141 = vector.broadcast %cst_42 : f32 to vector<8x256xf32>
    %142 = arith.addf %140, %141 : vector<8x256xf32>
    %143 = arith.select %13, %138, %142 : vector<8x256xi1>, vector<8x256xf32>
    %144 = vector.extract_strided_slice %143 {offsets = [0, 0], sizes = [8, 64], strides = [1, 1]} : vector<8x256xf32> to vector<8x64xf32>
    %145 = vector.extract_strided_slice %143 {offsets = [0, 64], sizes = [8, 64], strides = [1, 1]} : vector<8x256xf32> to vector<8x64xf32>
    %146 = vector.extract_strided_slice %143 {offsets = [0, 128], sizes = [8, 64], strides = [1, 1]} : vector<8x256xf32> to vector<8x64xf32>
    %147 = vector.extract_strided_slice %143 {offsets = [0, 192], sizes = [8, 64], strides = [1, 1]} : vector<8x256xf32> to vector<8x64xf32>
    %148 = arith.mulf %145, %131 : vector<8x64xf32>
    %149 = arith.mulf %144, %146 : vector<8x64xf32>
    %150 = arith.addf %148, %149 : vector<8x64xf32>
    %151 = math.tanh %150 : vector<8x64xf32>
    %152 = arith.mulf %147, %151 : vector<8x64xf32>
    %c56 = arith.constant 56 : index
    %c0_43 = arith.constant 0 : index
    %153 = vector.load %arg10[%c56, %c0_43] : memref<64x256xf32, #tpu.memory_space<vmem>>, vector<8x256xf32>
    %cst_44 = arith.constant dense<0.000000e+00> : vector<8x256xf32>
    %154 = tpu.matmul %152, %19, %cst_44 {dimension_numbers = #tpu.dot_dimension_numbers<[1], [0], [0], [1], [0, 0, 1, 1], [], []>} : vector<8x64xf32>, vector<64x256xf32>, vector<8x256xf32> -> vector<8x256xf32>
    %155 = arith.addf %153, %154 : vector<8x256xf32>
    %156 = arith.mulf %155, %16 : vector<8x256xf32>
    %157 = math.tanh %156 : vector<8x256xf32>
    %cst_45 = arith.constant 5.000000e-01 : f32
    %158 = vector.broadcast %cst_45 : f32 to vector<8x256xf32>
    %159 = arith.mulf %158, %157 : vector<8x256xf32>
    %cst_46 = arith.constant 5.000000e-01 : f32
    %160 = vector.broadcast %cst_46 : f32 to vector<8x256xf32>
    %161 = arith.addf %159, %160 : vector<8x256xf32>
    %162 = arith.select %13, %157, %161 : vector<8x256xi1>, vector<8x256xf32>
    %163 = vector.extract_strided_slice %162 {offsets = [0, 0], sizes = [8, 64], strides = [1, 1]} : vector<8x256xf32> to vector<8x64xf32>
    %164 = vector.extract_strided_slice %162 {offsets = [0, 64], sizes = [8, 64], strides = [1, 1]} : vector<8x256xf32> to vector<8x64xf32>
    %165 = vector.extract_strided_slice %162 {offsets = [0, 128], sizes = [8, 64], strides = [1, 1]} : vector<8x256xf32> to vector<8x64xf32>
    %166 = vector.extract_strided_slice %162 {offsets = [0, 192], sizes = [8, 64], strides = [1, 1]} : vector<8x256xf32> to vector<8x64xf32>
    %167 = arith.mulf %164, %150 : vector<8x64xf32>
    %168 = arith.mulf %163, %165 : vector<8x64xf32>
    %169 = arith.addf %167, %168 : vector<8x64xf32>
    %170 = math.tanh %169 : vector<8x64xf32>
    %171 = arith.mulf %166, %170 : vector<8x64xf32>
    %cst_47 = arith.constant 0.000000e+00 : f32
    %172 = vector.broadcast %cst_47 : f32 to vector<8x64xf32>
    %173 = arith.maximumf %171, %172 : vector<8x64xf32>
    %c0_48 = arith.constant 0 : index
    %c0_49 = arith.constant 0 : index
    %174 = vector.load %arg5[%c0_48, %c0_49] : memref<64x32xf32, #tpu.memory_space<vmem>>, vector<64x32xf32>
    %cst_50 = arith.constant dense<0.000000e+00> : vector<8x32xf32>
    %175 = tpu.matmul %173, %174, %cst_50 {dimension_numbers = #tpu.dot_dimension_numbers<[1], [0], [0], [1], [0, 0, 1, 1], [], []>} : vector<8x64xf32>, vector<64x32xf32>, vector<8x32xf32> -> vector<8x32xf32>
    %c0_51 = arith.constant 0 : index
    %c0_52 = arith.constant 0 : index
    %176 = vector.load %arg6[%c0_51, %c0_52] : memref<1x32xf32, #tpu.memory_space<vmem>>, vector<1x32xf32>
    %177 = vector.broadcast %176 : vector<1x32xf32> to vector<8x32xf32>
    %178 = arith.addf %175, %177 : vector<8x32xf32>
    %cst_53 = arith.constant 0.000000e+00 : f32
    %179 = vector.broadcast %cst_53 : f32 to vector<8x32xf32>
    %180 = arith.maximumf %178, %179 : vector<8x32xf32>
    %c0_54 = arith.constant 0 : index
    %c0_55 = arith.constant 0 : index
    %181 = vector.load %arg7[%c0_54, %c0_55] : memref<32x128xf32, #tpu.memory_space<vmem>>, vector<32x128xf32>
    %cst_56 = arith.constant dense<0.000000e+00> : vector<8x128xf32>
    %182 = tpu.matmul %180, %181, %cst_56 {dimension_numbers = #tpu.dot_dimension_numbers<[1], [0], [0], [1], [0, 0, 1, 1], [], []>} : vector<8x32xf32>, vector<32x128xf32>, vector<8x128xf32> -> vector<8x128xf32>
    %c0_57 = arith.constant 0 : index
    %c0_58 = arith.constant 0 : index
    %183 = vector.load %arg8[%c0_57, %c0_58] : memref<1x128xf32, #tpu.memory_space<vmem>>, vector<1x128xf32>
    %184 = vector.broadcast %183 : vector<1x128xf32> to vector<8x128xf32>
    %185 = arith.addf %182, %184 : vector<8x128xf32>
    %c0_59 = arith.constant 0 : index
    %c0_60 = arith.constant 0 : index
    %186 = vector.load %arg9[%c0_59, %c0_60] : memref<8x128xf32, #tpu.memory_space<vmem>>, vector<8x128xf32>
    tpu.vector_store %arg9[%c0_59, %c0_60], %185 {strides = array<i32>} : memref<8x128xf32, #tpu.memory_space<vmem>>, vector<8x128xf32>,
    return
  }
  func.func @transform_0(%arg0: i32) -> (i32, i32, i32) {
    %c0_i32 = arith.constant 0 : i32
    %c0_i32_0 = arith.constant 0 : i32
    %c0_i32_1 = arith.constant 0 : i32
    return %c0_i32, %arg0, %c0_i32_0 : i32, i32, i32
  }
  func.func @transform_1(%arg0: i32) -> (i32, i32) {
    %c0_i32 = arith.constant 0 : i32
    %c0_i32_0 = arith.constant 0 : i32
    %c0_i32_1 = arith.constant 0 : i32
    return %c0_i32, %c0_i32_0 : i32, i32
  }
  func.func @transform_2(%arg0: i32) -> (i32, i32) {
    %c0_i32 = arith.constant 0 : i32
    %c0_i32_0 = arith.constant 0 : i32
    %c0_i32_1 = arith.constant 0 : i32
    return %c0_i32, %c0_i32_0 : i32, i32
  }
  func.func @transform_3(%arg0: i32) -> (i32, i32) {
    %c0_i32 = arith.constant 0 : i32
    %c0_i32_0 = arith.constant 0 : i32
    %c0_i32_1 = arith.constant 0 : i32
    return %c0_i32, %c0_i32_0 : i32, i32
  }
  func.func @transform_4(%arg0: i32) -> (i32, i32) {
    %c0_i32 = arith.constant 0 : i32
    %c0_i32_0 = arith.constant 0 : i32
    %c0_i32_1 = arith.constant 0 : i32
    return %c0_i32, %c0_i32_0 : i32, i32
  }
  func.func @transform_5(%arg0: i32) -> (i32, i32) {
    %c0_i32 = arith.constant 0 : i32
    %c0_i32_0 = arith.constant 0 : i32
    %c0_i32_1 = arith.constant 0 : i32
    return %c0_i32, %c0_i32_0 : i32, i32
  }
  func.func @transform_6(%arg0: i32) -> (i32, i32) {
    %c0_i32 = arith.constant 0 : i32
    %c0_i32_0 = arith.constant 0 : i32
    %c0_i32_1 = arith.constant 0 : i32
    return %c0_i32, %c0_i32_0 : i32, i32
  }
  func.func @transform_7(%arg0: i32) -> (i32, i32) {
    %c0_i32 = arith.constant 0 : i32
    %c0_i32_0 = arith.constant 0 : i32
    %c0_i32_1 = arith.constant 0 : i32
    return %c0_i32, %c0_i32_0 : i32, i32
  }
  func.func @transform_8(%arg0: i32) -> (i32, i32) {
    %c0_i32 = arith.constant 0 : i32
    %c0_i32_0 = arith.constant 0 : i32
    return %arg0, %c0_i32 : i32, i32
  }
}

</mosaic_0001>

<llo_original>
// kernel: tpu_custom_call.1
$region0: #{tpu_custom_call.1}
  #allocation0 [shape = 'u32[]', space=smem, size = 0x4, offset = 0x4, fixed_abs, tag = 'smem constant byte address 0x4 - core index']
  #allocation1 [shape = 'u32[72,128]{1,0:T(1,128)}', space=vmem, size = 0x9000, scoped, tag = 'internal scratch']
  #allocation2 [shape = 'f32[64,256]{1,0:T(8,128)}', space=vmem, size = 0x10000, scoped, tag = 'scratch operand']
  %s0 = inlined_call_operand.vmem [shape: f32[8,8,14], index: 0, kind: input, shape index: {}]
  %s1 = inlined_call_operand.vmem [shape: f32[14,256], index: 1, kind: input, shape index: {}]
  %s2 = inlined_call_operand.hbm [shape: f32[64,256], index: 2, kind: input, shape index: {}]
  %s3 = inlined_call_operand.hbm [shape: f32[1,256], index: 3, kind: input, shape index: {}]
  %s4 = inlined_call_operand.vmem [shape: f32[64,32], index: 4, kind: input, shape index: {}]
  %s5 = inlined_call_operand.vmem [shape: f32[1,32], index: 5, kind: input, shape index: {}]
  %s6 = inlined_call_operand.hbm [shape: f32[32,128], index: 6, kind: input, shape index: {}]
  %s7 = inlined_call_operand.vmem [shape: f32[1,128], index: 7, kind: input, shape index: {}]
  %s8 = inlined_call_operand.hbm [shape: f32[8,128], index: 8, kind: output, shape index: {}]
  %s9 = sld [smem:[#allocation0]]
  $region54: #{tpu_custom_call.1} parent=0
    _
  %s11 = ssub.s32 1, %s9
  %s12 = scalar_select 0, %s11, %s9
  $region1: #{tpu_custom_call.1} parent=0
    #allocation3 [shape = 'u8[65536]{0}', space=vmem, size = 0x10000, scoped, tag = 'input window, operand 2, single buffered']
    #allocation4 [shape = 's32[1]{0}', space=sflag, size = 0x4, scoped, tag = 'scoped memory for tpu_custom_call.1']
    #allocation5 [shape = 's32[1]{0}', space=sflag, size = 0x4, scoped, tag = 'scoped memory for tpu_custom_call.1']
    #allocation6 [shape = 'u8[1024]{0}', space=vmem, size = 0x400, scoped, tag = 'input window, operand 3, single buffered']
    #allocation7 [shape = 's32[1]{0}', space=sflag, size = 0x4, scoped, tag = 'scoped memory for tpu_custom_call.1']
    #allocation8 [shape = 'u8[16384]{0}', space=vmem, size = 0x4000, scoped, tag = 'input window, operand 6, single buffered']
    #allocation9 [shape = 'u8[4096]{0}', space=vmem, size = 0x1000, scoped, tag = 'output window, operand 0, single buffered']
    %13 = vsyncpa [#allocation4], 0
    %14 = vsyncpa [#allocation7], 0
    %15 = vsyncpa [#allocation5], 0
    // Predicated region
    $region2: #{tpu_custom_call.1} parent=1 // pred_check
      _
    $region3: #{tpu_custom_call.1} parent=1 // pred_check_branch
      %17 = sbr.rel (0) target = $region5
    $region4: #{tpu_custom_call.1} parent=1 // pred_region
      _
    $region5: #{tpu_custom_call.1} parent=1 // pred_fallthru
      _
    // Predicated region
    $region6: #{tpu_custom_call.1} parent=1 // pred_check
      _
    $region7: #{tpu_custom_call.1} parent=1 // pred_check_branch
      %19 = sbr.rel (0) target = $region9
    $region8: #{tpu_custom_call.1} parent=1 // pred_region
      _
    $region9: #{tpu_custom_call.1} parent=1 // pred_fallthru
      _
    // Predicated region
    $region10: #{tpu_custom_call.1} parent=1 // pred_check
      _
    $region11: #{tpu_custom_call.1} parent=1 // pred_check_branch
      %21 = sbr.rel (0) target = $region13
    $region12: #{tpu_custom_call.1} parent=1 // pred_region
      %23 = vsyncadd [#allocation4], 0
      %s24 = sshll.u32 %s2, 4
      %s25 = int_to_ptr.hbm [resolvable:$true] %s24
      %s26 = sshll.u32 [#allocation3], 4
      %s27 = int_to_ptr.vmem [resolvable:$true] %s26
      %32 = dma.hbm_to_vmem [thread:$0]  %s25, 2048, %s27, [#allocation4], 256, 256, 16
    $region13: #{tpu_custom_call.1} parent=1 // pred_fallthru
      _
    // Predicated region
    $region14: #{tpu_custom_call.1} parent=1 // pred_check
      _
    $region15: #{tpu_custom_call.1} parent=1 // pred_check_branch
      %34 = sbr.rel (0) target = $region17
    $region16: #{tpu_custom_call.1} parent=1 // pred_region
      %36 = vsyncadd [#allocation7], 0
      %s38 = sshll.u32 %s3, 4
      %s39 = int_to_ptr.hbm [resolvable:$true] %s38
      %s40 = sshll.u32 [#allocation6], 4
      %s41 = int_to_ptr.vmem [resolvable:$true] %s40
      %43 = dma.hbm_to_vmem [thread:$0]  %s39, 32, %s41, [#allocation7]
    $region17: #{tpu_custom_call.1} parent=1 // pred_fallthru
      _
    // Predicated region
    $region18: #{tpu_custom_call.1} parent=1 // pred_check
      _
    $region19: #{tpu_custom_call.1} parent=1 // pred_check_branch
      %45 = sbr.rel (0) target = $region21
    $region20: #{tpu_custom_call.1} parent=1 // pred_region
      _
    $region21: #{tpu_custom_call.1} parent=1 // pred_fallthru
      _
    // Predicated region
    $region22: #{tpu_custom_call.1} parent=1 // pred_check
      _
    $region23: #{tpu_custom_call.1} parent=1 // pred_check_branch
      %47 = sbr.rel (0) target = $region25
    $region24: #{tpu_custom_call.1} parent=1 // pred_region
      _
    $region25: #{tpu_custom_call.1} parent=1 // pred_fallthru
      _
    // Predicated region
    $region26: #{tpu_custom_call.1} parent=1 // pred_check
      _
    $region27: #{tpu_custom_call.1} parent=1 // pred_check_branch
      %49 = sbr.rel (0) target = $region29
    $region28: #{tpu_custom_call.1} parent=1 // pred_region
      %51 = vsyncadd [#allocation7], 0
      %s52 = sshll.u32 %s6, 4
      %s53 = int_to_ptr.hbm [resolvable:$true] %s52
      %s54 = sshll.u32 [#allocation8], 4
      %s55 = int_to_ptr.vmem [resolvable:$true] %s54
      %60 = dma.hbm_to_vmem [thread:$0]  %s53, 512, %s55, [#allocation7], 128, 128, 8
    $region29: #{tpu_custom_call.1} parent=1 // pred_fallthru
      _
    // Predicated region
    $region30: #{tpu_custom_call.1} parent=1 // pred_check
      _
    $region31: #{tpu_custom_call.1} parent=1 // pred_check_branch
      %62 = sbr.rel (0) target = $region33
    $region32: #{tpu_custom_call.1} parent=1 // pred_region
      _
    $region33: #{tpu_custom_call.1} parent=1 // pred_fallthru
      _
    // Predicated region
    $region34: #{tpu_custom_call.1} parent=1 // pred_check
      _
    $region35: #{tpu_custom_call.1} parent=1 // pred_check_branch
      %64 = sbr.rel (0) target = $region37
    $region36: #{tpu_custom_call.1} parent=1 // pred_region
      %66 = dma.done [#allocation4], 2048
    $region37: #{tpu_custom_call.1} parent=1 // pred_fallthru
      _
    // Predicated region
    $region38: #{tpu_custom_call.1} parent=1 // pred_check
      _
    $region39: #{tpu_custom_call.1} parent=1 // pred_check_branch
      %68 = sbr.rel (0) target = $region41
    $region40: #{tpu_custom_call.1} parent=1 // pred_region
      %70 = dma.done [#allocation7], 32
    $region41: #{tpu_custom_call.1} parent=1 // pred_fallthru
      _
    // Predicated region
    $region42: #{tpu_custom_call.1} parent=1 // pred_check
      _
    $region43: #{tpu_custom_call.1} parent=1 // pred_check_branch
      %72 = sbr.rel (0) target = $region45
    $region44: #{tpu_custom_call.1} parent=1 // pred_region
      %74 = dma.done [#allocation7], 512
    $region45: #{tpu_custom_call.1} parent=1 // pred_fallthru
      _
    %v75 = vld [vmem:[%s0] sm:$0xff]
    %v76 = vld [vmem:[%s0 + $0x8] sm:$0xff]
    %v77 = vld [vmem:[%s0 + $0x10] sm:$0xff]
    %v78 = vld [vmem:[%s0 + $0x18] sm:$0xff]
    %v79 = vld [vmem:[%s0 + $0x20] sm:$0xff]
    %v80 = vld [vmem:[%s0 + $0x28] sm:$0xff]
    %v81 = vld [vmem:[%s0 + $0x30] sm:$0xff]
    %v82 = vld [vmem:[%s0 + $0x38] sm:$0xff]
    %v83 = vld [vmem:[%s1] sm:$0xff]
    %v84 = vld [vmem:[%s1 + $0x8] sm:$0xff]
    %v85 = vld [vmem:[%s1 + $0x10] sm:$0x3f]
    %v86 = vld [vmem:[%s1 + $0x18] sm:$0x3f]
    %v87 = vld [vmem:[#allocation6] sm:$0x3]
    %v89 = vperm.slane %v87, 0
    %v90 = vperm.slane %v87, 1
    %vm93 = vcmask 113664
    %v95 = vsel %vm93, %v75, 0
    %v98 = vsel %vm93, %v76, 0
    %v101 = vsel %vm93, %v77, 0
    %v104 = vsel %vm93, %v78, 0
    %v107 = vsel %vm93, %v79, 0
    %v110 = vsel %vm93, %v80, 0
    %v113 = vsel %vm93, %v81, 0
    %v116 = vsel %vm93, %v82, 0
    %vm118 = vcmask 1045504
    %v120 = vsel %vm118, %v85, 0
    %v123 = vsel %vm118, %v86, 0
    %125 = vmatpush.msra.mxu0 0.0
    %126 = vmatpush.msra.mxu0 0.0
    %127 = vmatpush.msra.mxu0 0.0
    %128 = vmatpush.msra.mxu0 0.0
    %129 = vmatpush.msra.mxu0 0.0
    %130 = vmatpush.msra.mxu0 0.0
    %131 = vmatpush.msra.mxu0 0.0
    %132 = vmatpush.msra.mxu0 0.0
    %133 = vmatpush.msra.mxu0 0.0
    %134 = vmatpush.msra.mxu0 0.0
    %135 = vmatpush.msra.mxu0 0.0
    %136 = vmatpush.msra.mxu0 0.0
    %137 = vmatpush.msra.mxu0 0.0
    %138 = vmatpush.msra.mxu0 0.0
    %139 = vmatpush.msra.mxu0 %v120
    %140 = vmatpush.msra.mxu0 %v83
    %141 = vmatmul.f32.gmra.mxu0 %v95
    %v142 = vpop.f32.mrf.mxu0
    %v143 = vadd.f32 %v89, %v142
    %144 = vmatmul.f32.gmra.mxu0 %v98
    %v145 = vpop.f32.mrf.mxu0
    %v146 = vadd.f32 %v89, %v145
    %147 = vmatmul.f32.gmra.mxu0 %v101
    %v148 = vpop.f32.mrf.mxu0
    %v149 = vadd.f32 %v89, %v148
    %150 = vmatmul.f32.gmra.mxu0 %v104
    %v151 = vpop.f32.mrf.mxu0
    %v152 = vadd.f32 %v89, %v151
    %153 = vmatmul.f32.gmra.mxu0 %v107
    %v154 = vpop.f32.mrf.mxu0
    %v155 = vadd.f32 %v89, %v154
    %156 = vmatmul.f32.gmra.mxu0 %v110
    %v157 = vpop.f32.mrf.mxu0
    %v158 = vadd.f32 %v89, %v157
    %159 = vmatmul.f32.gmra.mxu0 %v113
    %v160 = vpop.f32.mrf.mxu0
    %v161 = vadd.f32 %v89, %v160
    %162 = vmatmul.f32.gmra.mxu0 %v116
    %v163 = vpop.f32.mrf.mxu0
    %v164 = vadd.f32 %v89, %v163
    %165 = vdwg.mxu0
    %166 = vmatpush.msra.mxu0 0.0
    %167 = vmatpush.msra.mxu0 0.0
    %168 = vmatpush.msra.mxu0 0.0
    %169 = vmatpush.msra.mxu0 0.0
    %170 = vmatpush.msra.mxu0 0.0
    %171 = vmatpush.msra.mxu0 0.0
    %172 = vmatpush.msra.mxu0 0.0
    %173 = vmatpush.msra.mxu0 0.0
    %174 = vmatpush.msra.mxu0 0.0
    %175 = vmatpush.msra.mxu0 0.0
    %176 = vmatpush.msra.mxu0 0.0
    %177 = vmatpush.msra.mxu0 0.0
    %178 = vmatpush.msra.mxu0 0.0
    %179 = vmatpush.msra.mxu0 0.0
    %180 = vmatpush.msra.mxu0 %v123
    %181 = vmatpush.msra.mxu0 %v84
    %182 = vmatmul.f32.gmra.mxu0 %v95
    %v183 = vpop.f32.mrf.mxu0
    %v184 = vadd.f32 %v90, %v183
    %185 = vmatmul.f32.gmra.mxu0 %v98
    %v186 = vpop.f32.mrf.mxu0
    %v187 = vadd.f32 %v90, %v186
    %188 = vmatmul.f32.gmra.mxu0 %v101
    %v189 = vpop.f32.mrf.mxu0
    %v190 = vadd.f32 %v90, %v189
    %191 = vmatmul.f32.gmra.mxu0 %v104
    %v192 = vpop.f32.mrf.mxu0
    %v193 = vadd.f32 %v90, %v192
    %194 = vmatmul.f32.gmra.mxu0 %v107
    %v195 = vpop.f32.mrf.mxu0
    %v196 = vadd.f32 %v90, %v195
    %197 = vmatmul.f32.gmra.mxu0 %v110
    %v198 = vpop.f32.mrf.mxu0
    %v199 = vadd.f32 %v90, %v198
    %200 = vmatmul.f32.gmra.mxu0 %v113
    %v201 = vpop.f32.mrf.mxu0
    %v202 = vadd.f32 %v90, %v201
    %203 = vmatmul.f32.gmra.mxu0 %v116
    %v204 = vpop.f32.mrf.mxu0
    %v205 = vadd.f32 %v90, %v204
    %206 = vdwg.mxu0
    %207 = vst [vmem:[#allocation2] sm:$0xff] %v143
    %208 = vst [vmem:[#allocation2 + $0x8] sm:$0xff] %v184
    %209 = vst [vmem:[#allocation2 + $0x10] sm:$0xff] %v146
    %210 = vst [vmem:[#allocation2 + $0x18] sm:$0xff] %v187
    %211 = vst [vmem:[#allocation2 + $0x20] sm:$0xff] %v149
    %212 = vst [vmem:[#allocation2 + $0x28] sm:$0xff] %v190
    %213 = vst [vmem:[#allocation2 + $0x30] sm:$0xff] %v152
    %214 = vst [vmem:[#allocation2 + $0x38] sm:$0xff] %v193
    %215 = vst [vmem:[#allocation2 + $0x40] sm:$0xff] %v155
    %216 = vst [vmem:[#allocation2 + $0x48] sm:$0xff] %v196
    %217 = vst [vmem:[#allocation2 + $0x50] sm:$0xff] %v158
    %218 = vst [vmem:[#allocation2 + $0x58] sm:$0xff] %v199
    %219 = vst [vmem:[#allocation2 + $0x60] sm:$0xff] %v161
    %220 = vst [vmem:[#allocation2 + $0x68] sm:$0xff] %v202
    %221 = vst [vmem:[#allocation2 + $0x70] sm:$0xff] %v164
    %222 = vst [vmem:[#allocation2 + $0x78] sm:$0xff] %v205
    %v223 = vlaneseq
    %v224 = vand.u32 %v223, 127
    %v225 = vadd.s32 %v224, 128
    %vm226 = vcmp.ge.s32.totalorder %v224, 128
    %vm227 = vcmp.ge.s32.totalorder %v225, 128
    %vm228 = vcmp.lt.s32.totalorder %v224, 192
    %vm229 = vcmp.lt.s32.totalorder %v225, 192
    %vm230 = vmand %vm226, %vm228
    %vm231 = vmand %vm227, %vm229
    %v232 = vsel %vm230, 1.0, 0.5
    %v233 = vsel %vm231, 1.0, 0.5
    %v234 = vld [vmem:[#allocation3] sm:$0xff]
    %v235 = vld [vmem:[#allocation3 + $0x8] sm:$0xff]
    %v236 = vld [vmem:[#allocation3 + $0x10] sm:$0xff]
    %v237 = vld [vmem:[#allocation3 + $0x18] sm:$0xff]
    %v238 = vld [vmem:[#allocation3 + $0x20] sm:$0xff]
    %v239 = vld [vmem:[#allocation3 + $0x28] sm:$0xff]
    %v240 = vld [vmem:[#allocation3 + $0x30] sm:$0xff]
    %v241 = vld [vmem:[#allocation3 + $0x38] sm:$0xff]
    %v242 = vld [vmem:[#allocation3 + $0x40] sm:$0xff]
    %v243 = vld [vmem:[#allocation3 + $0x48] sm:$0xff]
    %v244 = vld [vmem:[#allocation3 + $0x50] sm:$0xff]
    %v245 = vld [vmem:[#allocation3 + $0x58] sm:$0xff]
    %v246 = vld [vmem:[#allocation3 + $0x60] sm:$0xff]
    %v247 = vld [vmem:[#allocation3 + $0x68] sm:$0xff]
    %v248 = vld [vmem:[#allocation3 + $0x70] sm:$0xff]
    %v249 = vld [vmem:[#allocation3 + $0x78] sm:$0xff]
    %v250 = vld [vmem:[#allocation2] sm:$0xff]
    %v251 = vld [vmem:[#allocation2 + $0x8] sm:$0xff]
    %vm252 = vcmask 523264
    %v254 = vsel %vm252, 0.0, 0
    %256 = vmatpush.msra.mxu0 0.0
    %257 = vmatpush.msra.mxu0 0.0
    %258 = vmatpush.msra.mxu0 0.0
    %259 = vmatpush.msra.mxu0 0.0
    %260 = vmatpush.msra.mxu0 0.0
    %261 = vmatpush.msra.mxu0 0.0
    %262 = vmatpush.msra.mxu0 0.0
    %263 = vmatpush.msra.mxu0 0.0
    %264 = vmatpush.msra.mxu0 %v248
    %265 = vmatpush.msra.mxu0 %v246
    %266 = vmatpush.msra.mxu0 %v244
    %267 = vmatpush.msra.mxu0 %v242
    %268 = vmatpush.msra.mxu0 %v240
    %269 = vmatpush.msra.mxu0 %v238
    %270 = vmatpush.msra.mxu0 %v236
    %271 = vmatpush.msra.mxu0 %v234
    %272 = vmatmul.f32.gmra.mxu0 %v254
    %v273 = vpop.f32.mrf.mxu0
    %v274 = vadd.f32 0.0, %v273
    %275 = vdwg.mxu0
    %276 = vmatpush.msra.mxu0 0.0
    %277 = vmatpush.msra.mxu0 0.0
    %278 = vmatpush.msra.mxu0 0.0
    %279 = vmatpush.msra.mxu0 0.0
    %280 = vmatpush.msra.mxu0 0.0
    %281 = vmatpush.msra.mxu0 0.0
    %282 = vmatpush.msra.mxu0 0.0
    %283 = vmatpush.msra.mxu0 0.0
    %284 = vmatpush.msra.mxu0 %v249
    %285 = vmatpush.msra.mxu0 %v247
    %286 = vmatpush.msra.mxu0 %v245
    %287 = vmatpush.msra.mxu0 %v243
    %288 = vmatpush.msra.mxu0 %v241
    %289 = vmatpush.msra.mxu0 %v239
    %290 = vmatpush.msra.mxu0 %v237
    %291 = vmatpush.msra.mxu0 %v235
    %292 = vmatmul.f32.gmra.mxu0 %v254
    %v293 = vpop.f32.mrf.mxu0
    %v294 = vadd.f32 0.0, %v293
    %295 = vdwg.mxu0
    %v296 = vadd.f32 %v250, %v274
    %v297 = vadd.f32 %v251, %v294
    %v298 = vmul.f32 %v296, %v232
    %v299 = vmul.f32 %v297, %v233
    %v300 = vtanh.pop %v298
    %v301 = vtanh.pop %v299
    %v302 = vmul.f32 %v300, 0.5
    %v303 = vmul.f32 %v301, 0.5
    %v304 = vadd.f32 %v302, 0.5
    %v305 = vadd.f32 %v303, 0.5
    %v306 = vsel %vm230, %v300, %v304
    %v307 = vsel %vm231, %v301, %v305
    %v308 = vmul.f32 %v306, 0.0
    %v309 = vmul.f32 %v306, %v307
    %311 = vrot.lane.b32.xlu0 %v309, 64
    %v312 = vpop.permute.xlu0 %311
    %v314 = vadd.f32 %v308, %v312
    %v315 = vtanh.pop %v314
    %v316 = vmul.f32 %v307, %v315
    %v317 = vld [vmem:[#allocation2 + $0x10] sm:$0xff]
    %v318 = vld [vmem:[#allocation2 + $0x18] sm:$0xff]
    %320 = vrot.lane.b32.xlu0 %v316, 64
    %v321 = vpop.permute.xlu0 %320
    %v322 = vsel %vm252, %v321, 0
    %324 = vmatpush.msra.mxu0 0.0
    %325 = vmatpush.msra.mxu0 0.0
    %326 = vmatpush.msra.mxu0 0.0
    %327 = vmatpush.msra.mxu0 0.0
    %328 = vmatpush.msra.mxu0 0.0
    %329 = vmatpush.msra.mxu0 0.0
    %330 = vmatpush.msra.mxu0 0.0
    %331 = vmatpush.msra.mxu0 0.0
    %332 = vmatpush.msra.mxu0 %v248
    %333 = vmatpush.msra.mxu0 %v246
    %334 = vmatpush.msra.mxu0 %v244
    %335 = vmatpush.msra.mxu0 %v242
    %336 = vmatpush.msra.mxu0 %v240
    %337 = vmatpush.msra.mxu0 %v238
    %338 = vmatpush.msra.mxu0 %v236
    %339 = vmatpush.msra.mxu0 %v234
    %340 = vmatmul.f32.gmra.mxu0 %v322
    %v341 = vpop.f32.mrf.mxu0
    %v342 = vadd.f32 0.0, %v341
    %343 = vdwg.mxu0
    %344 = vmatpush.msra.mxu0 0.0
    %345 = vmatpush.msra.mxu0 0.0
    %346 = vmatpush.msra.mxu0 0.0
    %347 = vmatpush.msra.mxu0 0.0
    %348 = vmatpush.msra.mxu0 0.0
    %349 = vmatpush.msra.mxu0 0.0
    %350 = vmatpush.msra.mxu0 0.0
    %351 = vmatpush.msra.mxu0 0.0
    %352 = vmatpush.msra.mxu0 %v249
    %353 = vmatpush.msra.mxu0 %v247
    %354 = vmatpush.msra.mxu0 %v245
    %355 = vmatpush.msra.mxu0 %v243
    %356 = vmatpush.msra.mxu0 %v241
    %357 = vmatpush.msra.mxu0 %v239
    %358 = vmatpush.msra.mxu0 %v237
    %359 = vmatpush.msra.mxu0 %v235
    %360 = vmatmul.f32.gmra.mxu0 %v322
    %v361 = vpop.f32.mrf.mxu0
    %v362 = vadd.f32 0.0, %v361
    %363 = vdwg.mxu0
    %v364 = vadd.f32 %v317, %v342
    %v365 = vadd.f32 %v318, %v362
    %v366 = vmul.f32 %v364, %v232
    %v367 = vmul.f32 %v365, %v233
    %v368 = vtanh.pop %v366
    %v369 = vtanh.pop %v367
    %v370 = vmul.f32 %v368, 0.5
    %v371 = vmul.f32 %v369, 0.5
    %v372 = vadd.f32 %v370, 0.5
    %v373 = vadd.f32 %v371, 0.5
    %v374 = vsel %vm230, %v368, %v372
    %v375 = vsel %vm231, %v369, %v373
    %v376 = vmul.f32 %v374, %v314
    %v377 = vmul.f32 %v374, %v375
    %379 = vrot.lane.b32.xlu0 %v377, 64
    %v380 = vpop.permute.xlu0 %379
    %v382 = vadd.f32 %v376, %v380
    %v383 = vtanh.pop %v382
    %v384 = vmul.f32 %v375, %v383
    %v385 = vld [vmem:[#allocation2 + $0x20] sm:$0xff]
    %v386 = vld [vmem:[#allocation2 + $0x28] sm:$0xff]
    %388 = vrot.lane.b32.xlu0 %v384, 64
    %v389 = vpop.permute.xlu0 %388
    %v390 = vsel %vm252, %v389, 0
    %392 = vmatpush.msra.mxu0 0.0
    %393 = vmatpush.msra.mxu0 0.0
    %394 = vmatpush.msra.mxu0 0.0
    %395 = vmatpush.msra.mxu0 0.0
    %396 = vmatpush.msra.mxu0 0.0
    %397 = vmatpush.msra.mxu0 0.0
    %398 = vmatpush.msra.mxu0 0.0
    %399 = vmatpush.msra.mxu0 0.0
    %400 = vmatpush.msra.mxu0 %v248
    %401 = vmatpush.msra.mxu0 %v246
    %402 = vmatpush.msra.mxu0 %v244
    %403 = vmatpush.msra.mxu0 %v242
    %404 = vmatpush.msra.mxu0 %v240
    %405 = vmatpush.msra.mxu0 %v238
    %406 = vmatpush.msra.mxu0 %v236
    %407 = vmatpush.msra.mxu0 %v234
    %408 = vmatmul.f32.gmra.mxu0 %v390
    %v409 = vpop.f32.mrf.mxu0
    %v410 = vadd.f32 0.0, %v409
    %411 = vdwg.mxu0
    %412 = vmatpush.msra.mxu0 0.0
    %413 = vmatpush.msra.mxu0 0.0
    %414 = vmatpush.msra.mxu0 0.0
    %415 = vmatpush.msra.mxu0 0.0
    %416 = vmatpush.msra.mxu0 0.0
    %417 = vmatpush.msra.mxu0 0.0
    %418 = vmatpush.msra.mxu0 0.0
    %419 = vmatpush.msra.mxu0 0.0
    %420 = vmatpush.msra.mxu0 %v249
    %421 = vmatpush.msra.mxu0 %v247
    %422 = vmatpush.msra.mxu0 %v245
    %423 = vmatpush.msra.mxu0 %v243
    %424 = vmatpush.msra.mxu0 %v241
    %425 = vmatpush.msra.mxu0 %v239
    %426 = vmatpush.msra.mxu0 %v237
    %427 = vmatpush.msra.mxu0 %v235
    %428 = vmatmul.f32.gmra.mxu0 %v390
    %v429 = vpop.f32.mrf.mxu0
    %v430 = vadd.f32 0.0, %v429
    %431 = vdwg.mxu0
    %v432 = vadd.f32 %v385, %v410
    %v433 = vadd.f32 %v386, %v430
    %v434 = vmul.f32 %v432, %v232
    %v435 = vmul.f32 %v433, %v233
    %v436 = vtanh.pop %v434
    %v437 = vtanh.pop %v435
    %v438 = vmul.f32 %v436, 0.5
    %v439 = vmul.f32 %v437, 0.5
    %v440 = vadd.f32 %v438, 0.5
    %v441 = vadd.f32 %v439, 0.5
    %v442 = vsel %vm230, %v436, %v440
    %v443 = vsel %vm231, %v437, %v441
    %v444 = vmul.f32 %v442, %v382
    %v445 = vmul.f32 %v442, %v443
    %447 = vrot.lane.b32.xlu0 %v445, 64
    %v448 = vpop.permute.xlu0 %447
    %v450 = vadd.f32 %v444, %v448
    %v451 = vtanh.pop %v450
    %v452 = vmul.f32 %v443, %v451
    %v453 = vld [vmem:[#allocation2 + $0x30] sm:$0xff]
    %v454 = vld [vmem:[#allocation2 + $0x38] sm:$0xff]
    %456 = vrot.lane.b32.xlu0 %v452, 64
    %v457 = vpop.permute.xlu0 %456
    %v458 = vsel %vm252, %v457, 0
    %460 = vmatpush.msra.mxu0 0.0
    %461 = vmatpush.msra.mxu0 0.0
    %462 = vmatpush.msra.mxu0 0.0
    %463 = vmatpush.msra.mxu0 0.0
    %464 = vmatpush.msra.mxu0 0.0
    %465 = vmatpush.msra.mxu0 0.0
    %466 = vmatpush.msra.mxu0 0.0
    %467 = vmatpush.msra.mxu0 0.0
    %468 = vmatpush.msra.mxu0 %v248
    %469 = vmatpush.msra.mxu0 %v246
    %470 = vmatpush.msra.mxu0 %v244
    %471 = vmatpush.msra.mxu0 %v242
    %472 = vmatpush.msra.mxu0 %v240
    %473 = vmatpush.msra.mxu0 %v238
    %474 = vmatpush.msra.mxu0 %v236
    %475 = vmatpush.msra.mxu0 %v234
    %476 = vmatmul.f32.gmra.mxu0 %v458
    %v477 = vpop.f32.mrf.mxu0
    %v478 = vadd.f32 0.0, %v477
    %479 = vdwg.mxu0
    %480 = vmatpush.msra.mxu0 0.0
    %481 = vmatpush.msra.mxu0 0.0
    %482 = vmatpush.msra.mxu0 0.0
    %483 = vmatpush.msra.mxu0 0.0
    %484 = vmatpush.msra.mxu0 0.0
    %485 = vmatpush.msra.mxu0 0.0
    %486 = vmatpush.msra.mxu0 0.0
    %487 = vmatpush.msra.mxu0 0.0
    %488 = vmatpush.msra.mxu0 %v249
    %489 = vmatpush.msra.mxu0 %v247
    %490 = vmatpush.msra.mxu0 %v245
    %491 = vmatpush.msra.mxu0 %v243
    %492 = vmatpush.msra.mxu0 %v241
    %493 = vmatpush.msra.mxu0 %v239
    %494 = vmatpush.msra.mxu0 %v237
    %495 = vmatpush.msra.mxu0 %v235
    %496 = vmatmul.f32.gmra.mxu0 %v458
    %v497 = vpop.f32.mrf.mxu0
    %v498 = vadd.f32 0.0, %v497
    %499 = vdwg.mxu0
    %v500 = vadd.f32 %v453, %v478
    %v501 = vadd.f32 %v454, %v498
    %v502 = vmul.f32 %v500, %v232
    %v503 = vmul.f32 %v501, %v233
    %v504 = vtanh.pop %v502
    %v505 = vtanh.pop %v503
    %v506 = vmul.f32 %v504, 0.5
    %v507 = vmul.f32 %v505, 0.5
    %v508 = vadd.f32 %v506, 0.5
    %v509 = vadd.f32 %v507, 0.5
    %v510 = vsel %vm230, %v504, %v508
    %v511 = vsel %vm231, %v505, %v509
    %v512 = vmul.f32 %v510, %v450
    %v513 = vmul.f32 %v510, %v511
    %515 = vrot.lane.b32.xlu0 %v513, 64
    %v516 = vpop.permute.xlu0 %515
    %v518 = vadd.f32 %v512, %v516
    %v519 = vtanh.pop %v518
    %v520 = vmul.f32 %v511, %v519
    %v521 = vld [vmem:[#allocation2 + $0x40] sm:$0xff]
    %v522 = vld [vmem:[#allocation2 + $0x48] sm:$0xff]
    %524 = vrot.lane.b32.xlu0 %v520, 64
    %v525 = vpop.permute.xlu0 %524
    %v526 = vsel %vm252, %v525, 0
    %528 = vmatpush.msra.mxu0 0.0
    %529 = vmatpush.msra.mxu0 0.0
    %530 = vmatpush.msra.mxu0 0.0
    %531 = vmatpush.msra.mxu0 0.0
    %532 = vmatpush.msra.mxu0 0.0
    %533 = vmatpush.msra.mxu0 0.0
    %534 = vmatpush.msra.mxu0 0.0
    %535 = vmatpush.msra.mxu0 0.0
    %536 = vmatpush.msra.mxu0 %v248
    %537 = vmatpush.msra.mxu0 %v246
    %538 = vmatpush.msra.mxu0 %v244
    %539 = vmatpush.msra.mxu0 %v242
    %540 = vmatpush.msra.mxu0 %v240
    %541 = vmatpush.msra.mxu0 %v238
    %542 = vmatpush.msra.mxu0 %v236
    %543 = vmatpush.msra.mxu0 %v234
    %544 = vmatmul.f32.gmra.mxu0 %v526
    %v545 = vpop.f32.mrf.mxu0
    %v546 = vadd.f32 0.0, %v545
    %547 = vdwg.mxu0
    %548 = vmatpush.msra.mxu0 0.0
    %549 = vmatpush.msra.mxu0 0.0
    %550 = vmatpush.msra.mxu0 0.0
    %551 = vmatpush.msra.mxu0 0.0
    %552 = vmatpush.msra.mxu0 0.0
    %553 = vmatpush.msra.mxu0 0.0
    %554 = vmatpush.msra.mxu0 0.0
    %555 = vmatpush.msra.mxu0 0.0
    %556 = vmatpush.msra.mxu0 %v249
    %557 = vmatpush.msra.mxu0 %v247
    %558 = vmatpush.msra.mxu0 %v245
    %559 = vmatpush.msra.mxu0 %v243
    %560 = vmatpush.msra.mxu0 %v241
    %561 = vmatpush.msra.mxu0 %v239
    %562 = vmatpush.msra.mxu0 %v237
    %563 = vmatpush.msra.mxu0 %v235
    %564 = vmatmul.f32.gmra.mxu0 %v526
    %v565 = vpop.f32.mrf.mxu0
    %v566 = vadd.f32 0.0, %v565
    %567 = vdwg.mxu0
    %v568 = vadd.f32 %v521, %v546
    %v569 = vadd.f32 %v522, %v566
    %v570 = vmul.f32 %v568, %v232
    %v571 = vmul.f32 %v569, %v233
    %v572 = vtanh.pop %v570
    %v573 = vtanh.pop %v571
    %v574 = vmul.f32 %v572, 0.5
    %v575 = vmul.f32 %v573, 0.5
    %v576 = vadd.f32 %v574, 0.5
    %v577 = vadd.f32 %v575, 0.5
    %v578 = vsel %vm230, %v572, %v576
    %v579 = vsel %vm231, %v573, %v577
    %v580 = vmul.f32 %v578, %v518
    %v581 = vmul.f32 %v578, %v579
    %583 = vrot.lane.b32.xlu0 %v581, 64
    %v584 = vpop.permute.xlu0 %583
    %v586 = vadd.f32 %v580, %v584
    %v587 = vtanh.pop %v586
    %v588 = vmul.f32 %v579, %v587
    %v589 = vld [vmem:[#allocation2 + $0x50] sm:$0xff]
    %v590 = vld [vmem:[#allocation2 + $0x58] sm:$0xff]
    %592 = vrot.lane.b32.xlu0 %v588, 64
    %v593 = vpop.permute.xlu0 %592
    %v594 = vsel %vm252, %v593, 0
    %596 = vmatpush.msra.mxu0 0.0
    %597 = vmatpush.msra.mxu0 0.0
    %598 = vmatpush.msra.mxu0 0.0
    %599 = vmatpush.msra.mxu0 0.0
    %600 = vmatpush.msra.mxu0 0.0
    %601 = vmatpush.msra.mxu0 0.0
    %602 = vmatpush.msra.mxu0 0.0
    %603 = vmatpush.msra.mxu0 0.0
    %604 = vmatpush.msra.mxu0 %v248
    %605 = vmatpush.msra.mxu0 %v246
    %606 = vmatpush.msra.mxu0 %v244
    %607 = vmatpush.msra.mxu0 %v242
    %608 = vmatpush.msra.mxu0 %v240
    %609 = vmatpush.msra.mxu0 %v238
    %610 = vmatpush.msra.mxu0 %v236
    %611 = vmatpush.msra.mxu0 %v234
    %612 = vmatmul.f32.gmra.mxu0 %v594
    %v613 = vpop.f32.mrf.mxu0
    %v614 = vadd.f32 0.0, %v613
    %615 = vdwg.mxu0
    %616 = vmatpush.msra.mxu0 0.0
    %617 = vmatpush.msra.mxu0 0.0
    %618 = vmatpush.msra.mxu0 0.0
    %619 = vmatpush.msra.mxu0 0.0
    %620 = vmatpush.msra.mxu0 0.0
    %621 = vmatpush.msra.mxu0 0.0
    %622 = vmatpush.msra.mxu0 0.0
    %623 = vmatpush.msra.mxu0 0.0
    %624 = vmatpush.msra.mxu0 %v249
    %625 = vmatpush.msra.mxu0 %v247
    %626 = vmatpush.msra.mxu0 %v245
    %627 = vmatpush.msra.mxu0 %v243
    %628 = vmatpush.msra.mxu0 %v241
    %629 = vmatpush.msra.mxu0 %v239
    %630 = vmatpush.msra.mxu0 %v237
    %631 = vmatpush.msra.mxu0 %v235
    %632 = vmatmul.f32.gmra.mxu0 %v594
    %v633 = vpop.f32.mrf.mxu0
    %v634 = vadd.f32 0.0, %v633
    %635 = vdwg.mxu0
    %v636 = vadd.f32 %v589, %v614
    %v637 = vadd.f32 %v590, %v634
    %v638 = vmul.f32 %v636, %v232
    %v639 = vmul.f32 %v637, %v233
    %v640 = vtanh.pop %v638
    %v641 = vtanh.pop %v639
    %v642 = vmul.f32 %v640, 0.5
    %v643 = vmul.f32 %v641, 0.5
    %v644 = vadd.f32 %v642, 0.5
    %v645 = vadd.f32 %v643, 0.5
    %v646 = vsel %vm230, %v640, %v644
    %v647 = vsel %vm231, %v641, %v645
    %v648 = vmul.f32 %v646, %v586
    %v649 = vmul.f32 %v646, %v647
    %651 = vrot.lane.b32.xlu0 %v649, 64
    %v652 = vpop.permute.xlu0 %651
    %v654 = vadd.f32 %v648, %v652
    %v655 = vtanh.pop %v654
    %v656 = vmul.f32 %v647, %v655
    %v657 = vld [vmem:[#allocation2 + $0x60] sm:$0xff]
    %v658 = vld [vmem:[#allocation2 + $0x68] sm:$0xff]
    %660 = vrot.lane.b32.xlu0 %v656, 64
    %v661 = vpop.permute.xlu0 %660
    %v662 = vsel %vm252, %v661, 0
    %664 = vmatpush.msra.mxu0 0.0
    %665 = vmatpush.msra.mxu0 0.0
    %666 = vmatpush.msra.mxu0 0.0
    %667 = vmatpush.msra.mxu0 0.0
    %668 = vmatpush.msra.mxu0 0.0
    %669 = vmatpush.msra.mxu0 0.0
    %670 = vmatpush.msra.mxu0 0.0
    %671 = vmatpush.msra.mxu0 0.0
    %672 = vmatpush.msra.mxu0 %v248
    %673 = vmatpush.msra.mxu0 %v246
    %674 = vmatpush.msra.mxu0 %v244
    %675 = vmatpush.msra.mxu0 %v242
    %676 = vmatpush.msra.mxu0 %v240
    %677 = vmatpush.msra.mxu0 %v238
    %678 = vmatpush.msra.mxu0 %v236
    %679 = vmatpush.msra.mxu0 %v234
    %680 = vmatmul.f32.gmra.mxu0 %v662
    %v681 = vpop.f32.mrf.mxu0
    %v682 = vadd.f32 0.0, %v681
    %683 = vdwg.mxu0
    %684 = vmatpush.msra.mxu0 0.0
    %685 = vmatpush.msra.mxu0 0.0
    %686 = vmatpush.msra.mxu0 0.0
    %687 = vmatpush.msra.mxu0 0.0
    %688 = vmatpush.msra.mxu0 0.0
    %689 = vmatpush.msra.mxu0 0.0
    %690 = vmatpush.msra.mxu0 0.0
    %691 = vmatpush.msra.mxu0 0.0
    %692 = vmatpush.msra.mxu0 %v249
    %693 = vmatpush.msra.mxu0 %v247
    %694 = vmatpush.msra.mxu0 %v245
    %695 = vmatpush.msra.mxu0 %v243
    %696 = vmatpush.msra.mxu0 %v241
    %697 = vmatpush.msra.mxu0 %v239
    %698 = vmatpush.msra.mxu0 %v237
    %699 = vmatpush.msra.mxu0 %v235
    %700 = vmatmul.f32.gmra.mxu0 %v662
    %v701 = vpop.f32.mrf.mxu0
    %v702 = vadd.f32 0.0, %v701
    %703 = vdwg.mxu0
    %v704 = vadd.f32 %v657, %v682
    %v705 = vadd.f32 %v658, %v702
    %v706 = vmul.f32 %v704, %v232
    %v707 = vmul.f32 %v705, %v233
    %v708 = vtanh.pop %v706
    %v709 = vtanh.pop %v707
    %v710 = vmul.f32 %v708, 0.5
    %v711 = vmul.f32 %v709, 0.5
    %v712 = vadd.f32 %v710, 0.5
    %v713 = vadd.f32 %v711, 0.5
    %v714 = vsel %vm230, %v708, %v712
    %v715 = vsel %vm231, %v709, %v713
    %v716 = vmul.f32 %v714, %v654
    %v717 = vmul.f32 %v714, %v715
    %719 = vrot.lane.b32.xlu0 %v717, 64
    %v720 = vpop.permute.xlu0 %719
    %v722 = vadd.f32 %v716, %v720
    %v723 = vtanh.pop %v722
    %v724 = vmul.f32 %v715, %v723
    %v725 = vld [vmem:[#allocation2 + $0x70] sm:$0xff]
    %v726 = vld [vmem:[#allocation2 + $0x78] sm:$0xff]
    %728 = vrot.lane.b32.xlu0 %v724, 64
    %v729 = vpop.permute.xlu0 %728
    %v730 = vsel %vm252, %v729, 0
    %732 = vmatpush.msra.mxu0 0.0
    %733 = vmatpush.msra.mxu0 0.0
    %734 = vmatpush.msra.mxu0 0.0
    %735 = vmatpush.msra.mxu0 0.0
    %736 = vmatpush.msra.mxu0 0.0
    %737 = vmatpush.msra.mxu0 0.0
    %738 = vmatpush.msra.mxu0 0.0
    %739 = vmatpush.msra.mxu0 0.0
    %740 = vmatpush.msra.mxu0 %v248
    %741 = vmatpush.msra.mxu0 %v246
    %742 = vmatpush.msra.mxu0 %v244
    %743 = vmatpush.msra.mxu0 %v242
    %744 = vmatpush.msra.mxu0 %v240
    %745 = vmatpush.msra.mxu0 %v238
    %746 = vmatpush.msra.mxu0 %v236
    %747 = vmatpush.msra.mxu0 %v234
    %748 = vmatmul.f32.gmra.mxu0 %v730
    %v749 = vpop.f32.mrf.mxu0
    %v750 = vadd.f32 0.0, %v749
    %751 = vdwg.mxu0
    %752 = vmatpush.msra.mxu0 0.0
    %753 = vmatpush.msra.mxu0 0.0
    %754 = vmatpush.msra.mxu0 0.0
    %755 = vmatpush.msra.mxu0 0.0
    %756 = vmatpush.msra.mxu0 0.0
    %757 = vmatpush.msra.mxu0 0.0
    %758 = vmatpush.msra.mxu0 0.0
    %759 = vmatpush.msra.mxu0 0.0
    %760 = vmatpush.msra.mxu0 %v249
    %761 = vmatpush.msra.mxu0 %v247
    %762 = vmatpush.msra.mxu0 %v245
    %763 = vmatpush.msra.mxu0 %v243
    %764 = vmatpush.msra.mxu0 %v241
    %765 = vmatpush.msra.mxu0 %v239
    %766 = vmatpush.msra.mxu0 %v237
    %767 = vmatpush.msra.mxu0 %v235
    %768 = vmatmul.f32.gmra.mxu0 %v730
    %v769 = vpop.f32.mrf.mxu0
    %v770 = vadd.f32 0.0, %v769
    %771 = vdwg.mxu0
    %v772 = vadd.f32 %v725, %v750
    %v773 = vadd.f32 %v726, %v770
    %v774 = vmul.f32 %v772, %v232
    %v775 = vmul.f32 %v773, %v233
    %v776 = vtanh.pop %v774
    %v777 = vtanh.pop %v775
    %v778 = vmul.f32 %v776, 0.5
    %v779 = vmul.f32 %v777, 0.5
    %v780 = vadd.f32 %v778, 0.5
    %v781 = vadd.f32 %v779, 0.5
    %v782 = vsel %vm230, %v776, %v780
    %v783 = vsel %vm231, %v777, %v781
    %v784 = vmul.f32 %v782, %v722
    %v785 = vmul.f32 %v782, %v783
    %787 = vrot.lane.b32.xlu0 %v785, 64
    %v788 = vpop.permute.xlu0 %787
    %v790 = vadd.f32 %v784, %v788
    %v791 = vtanh.pop %v790
    %v792 = vmul.f32 %v783, %v791
    %v793 = vmax.f32 %v792, 0.0
    %v794 = vld [vmem:[%s4] sm:$0xff]
    %v795 = vld [vmem:[%s4 + $0x8] sm:$0xff]
    %v796 = vld [vmem:[%s4 + $0x10] sm:$0xff]
    %v797 = vld [vmem:[%s4 + $0x18] sm:$0xff]
    %v798 = vld [vmem:[%s4 + $0x20] sm:$0xff]
    %v799 = vld [vmem:[%s4 + $0x28] sm:$0xff]
    %v800 = vld [vmem:[%s4 + $0x30] sm:$0xff]
    %v801 = vld [vmem:[%s4 + $0x38] sm:$0xff]
    %v802 = vld [vmem:[%s5] sm:$0x1]
    %v804 = vperm.slane %v802, 0
    %807 = vrot.lane.b32.xlu0 %v793, 64
    %v808 = vpop.permute.xlu0 %807
    %v809 = vsel %vm252, %v808, 0
    %811 = vmatpush.msra.mxu0 0.0
    %812 = vmatpush.msra.mxu0 0.0
    %813 = vmatpush.msra.mxu0 0.0
    %814 = vmatpush.msra.mxu0 0.0
    %815 = vmatpush.msra.mxu0 0.0
    %816 = vmatpush.msra.mxu0 0.0
    %817 = vmatpush.msra.mxu0 0.0
    %818 = vmatpush.msra.mxu0 0.0
    %819 = vmatpush.msra.mxu0 %v801
    %820 = vmatpush.msra.mxu0 %v800
    %821 = vmatpush.msra.mxu0 %v799
    %822 = vmatpush.msra.mxu0 %v798
    %823 = vmatpush.msra.mxu0 %v797
    %824 = vmatpush.msra.mxu0 %v796
    %825 = vmatpush.msra.mxu0 %v795
    %826 = vmatpush.msra.mxu0 %v794
    %827 = vmatmul.f32.gmra.mxu0 %v809
    %v828 = vpop.f32.mrf.mxu0
    %v829 = vadd.f32 %v804, %v828
    %830 = vdwg.mxu0
    %v831 = vmax.f32 %v829, 0.0
    %v832 = vld [vmem:[#allocation8] sm:$0xff]
    %v833 = vld [vmem:[#allocation8 + $0x8] sm:$0xff]
    %v834 = vld [vmem:[#allocation8 + $0x10] sm:$0xff]
    %v835 = vld [vmem:[#allocation8 + $0x18] sm:$0xff]
    %v836 = vld [vmem:[%s7] sm:$0x1]
    %v838 = vperm.slane %v836, 0
    %vm840 = vcmask 261120
    %v842 = vsel %vm840, %v831, 0
    %844 = vmatpush.msra.mxu0 0.0
    %845 = vmatpush.msra.mxu0 0.0
    %846 = vmatpush.msra.mxu0 0.0
    %847 = vmatpush.msra.mxu0 0.0
    %848 = vmatpush.msra.mxu0 0.0
    %849 = vmatpush.msra.mxu0 0.0
    %850 = vmatpush.msra.mxu0 0.0
    %851 = vmatpush.msra.mxu0 0.0
    %852 = vmatpush.msra.mxu0 0.0
    %853 = vmatpush.msra.mxu0 0.0
    %854 = vmatpush.msra.mxu0 0.0
    %855 = vmatpush.msra.mxu0 0.0
    %856 = vmatpush.msra.mxu0 %v835
    %857 = vmatpush.msra.mxu0 %v834
    %858 = vmatpush.msra.mxu0 %v833
    %859 = vmatpush.msra.mxu0 %v832
    %860 = vmatmul.f32.gmra.mxu0 %v842
    %v861 = vpop.f32.mrf.mxu0
    %v862 = vadd.f32 %v838, %v861
    %863 = vdwg.mxu0
    %864 = vst [vmem:[#allocation9] sm:$0xff] %v862
    // Predicated region
    $region46: #{tpu_custom_call.1} parent=1 // pred_check
      _
    $region47: #{tpu_custom_call.1} parent=1 // pred_check_branch
      %866 = sbr.rel (0) target = $region49
    $region48: #{tpu_custom_call.1} parent=1 // pred_region
      %868 = vsyncadd [#allocation5], 0
      %s870 = sshll.u32 [#allocation9], 4
      %s871 = int_to_ptr.vmem [resolvable:$true] %s870
      %s872 = sshll.u32 %s8, 4
      %s873 = int_to_ptr.hbm [resolvable:$true] %s872
      %875 = dma.vmem_to_hbm [thread:$0]  %s871, 128, %s873, [#allocation5]
    $region49: #{tpu_custom_call.1} parent=1 // pred_fallthru
      _
    // Predicated region
    $region50: #{tpu_custom_call.1} parent=1 // pred_check
      _
    $region51: #{tpu_custom_call.1} parent=1 // pred_check_branch
      %877 = sbr.rel (0) target = $region53
    $region52: #{tpu_custom_call.1} parent=1 // pred_region
      %879 = dma.done [#allocation5], 128
    $region53: #{tpu_custom_call.1} parent=1 // pred_fallthru
      _
    %880 = vsyncpa [#allocation4], 1
    %881 = vsyncpa [#allocation7], 1
    %882 = vsyncpa [#allocation5], 1

</llo_original>
